<compile_context>
chip_gen: v6e
topology: v6e:2x2x1
jax: 0.10.0
libtpu: 0.0.40
codegen_flags: <defaults>
</compile_context>

<pallas_src>
import functools
import math

import jax
import jax.numpy as jnp
from jax.experimental import pallas as pl
from jax.experimental.pallas import tpu as pltpu

GN_EPS = 1e-5        # PyTorch GroupNorm default eps
GN_GROUPS = 32
ACT_DTYPE = jnp.bfloat16   # inter-kernel activation dtype


def _round_up(v, m):
    return ((v + m - 1) // m) * m


# ----------------------------- Pallas kernels -----------------------------

def _gemm_kernel(a_ref, w_ref, b_ref, *rest, silu_in, silu_out):
    """(M,K)@(K,N)+bias, bf16 operands / f32 accum, fused SiLU / residual."""
    if len(rest) == 2:
        add_ref, o_ref = rest
    else:
        (o_ref,) = rest
        add_ref = None
    a = a_ref[...]
    if silu_in:
        a = a.astype(jnp.float32)
        a = a * jax.nn.sigmoid(a)
    y = jnp.dot(a.astype(jnp.bfloat16), w_ref[...],
                preferred_element_type=jnp.float32)
    y = y + b_ref[...]
    if add_ref is not None:
        y = y + add_ref[...].astype(jnp.float32)
    if silu_out:
        y = y * jax.nn.sigmoid(y)
    o_ref[...] = y.astype(o_ref.dtype)


@functools.lru_cache(maxsize=None)
def _gemm_call(M, K, N, silu_in, silu_out, has_add, out_dtype, row_blocks):
    kernel = functools.partial(_gemm_kernel, silu_in=silu_in, silu_out=silu_out)
    mb = M // row_blocks
    in_specs = [
        pl.BlockSpec((mb, K), lambda i: (i, 0)),   # activations (row-split)
        pl.BlockSpec((K, N), lambda i: (0, 0)),    # weight (resident)
        pl.BlockSpec((1, N), lambda i: (0, 0)),    # bias   (resident)
    ]
    if has_add:
        in_specs.append(pl.BlockSpec((mb, N), lambda i: (i, 0)))
    return pl.pallas_call(
        kernel,
        out_shape=jax.ShapeDtypeStruct((M, N), out_dtype),
        grid=(row_blocks,),
        in_specs=in_specs,
        out_specs=pl.BlockSpec((mb, N), lambda i: (i, 0)),
        compiler_params=pltpu.CompilerParams(dimension_semantics=("parallel",)),
    )


def gemm(a, w, b, *, silu_in=False, silu_out=False, add=None,
         out_dtype=ACT_DTYPE):
    """a: (M, K), w: (K, N) bf16, b: (1, N) f32 -> (M, N)."""
    M, K = a.shape
    N = w.shape[1]
    # 2-way row split only when there is enough work (lets v7x use both TCs).
    row_blocks = 2 if (M % 16 == 0 and M >= 256) else 1
    fn = _gemm_call(M, K, N, silu_in, silu_out, add is not None,
                    out_dtype, row_blocks)
    if add is None:
        return fn(a, w, b)
    return fn(a, w, b, add)


def _conv3x3_kernel(xe_ref, w_ref, b_ref, o_ref, *, wp, m_out):
    # xe_ref: (rows_in, Cin) bf16 -- whole batch, padded images flattened
    #         row-major with per-image stride m_img.
    # w_ref : (9, Cin, Cout) bf16 taps.  b_ref: (1, Cout) f32.
    # o_ref : (m_out, Cout) bf16 -- outputs on the padded grid, single store.
    acc = None
    for k in range(9):
        shift = (k // 3) * wp + (k % 3)
        a = xe_ref[pl.ds(shift, m_out), :]
        c = jnp.dot(a, w_ref[k], preferred_element_type=jnp.float32)
        acc = c if acc is None else acc + c            # local f32 accumulator
    o_ref[...] = (acc + b_ref[...]).astype(o_ref.dtype)


@functools.lru_cache(maxsize=None)
def _conv3x3_call(m_out, rows_in, cin, cout, wp):
    kernel = functools.partial(_conv3x3_kernel, wp=wp, m_out=m_out)
    return pl.pallas_call(
        kernel,
        out_shape=jax.ShapeDtypeStruct((m_out, cout), ACT_DTYPE),
    )


def conv2d_3x3(p, x, stride=1):
    """3x3 conv, padding=1, NHWC.  Batch folded into rows; im2col fused
    in-kernel as 9 shifted GEMMs with a single output store."""
    B, H, W, Cin = x.shape
    Cout = p["w9"].shape[2]
    Hp, Wp = H + 2, W + 2
    m_img = Hp * Wp
    ext = 2 * Wp + 2                         # max tap shift
    m_valid = B * m_img
    m_out = _round_up(m_valid, 8)
    rows_in = _round_up(m_out + ext, 8)
    xp = jnp.pad(x.astype(ACT_DTYPE), ((0, 0), (1, 1), (1, 1), (0, 0)))
    xe = xp.reshape(m_valid, Cin)
    xe = jnp.pad(xe, ((0, rows_in - m_valid), (0, 0)))
    y = _conv3x3_call(m_out, rows_in, Cin, Cout, Wp)(xe, p["w9"], p["b"])
    y = y[:m_valid].reshape(B, Hp, Wp, Cout)
    if stride == 2:
        # stride-2 (pad=1) conv == stride-1 output subsampled at even indices.
        return y[:, :H:2, :W:2, :]
    return y[:, :H, :W, :]


@functools.lru_cache(maxsize=None)
def _group_matrix(C):
    cg = C // GN_GROUPS
    g = jnp.arange(C) // cg
    return (g[:, None] == g[None, :]).astype(jnp.float32) / cg


def _gn_stats(x, gmat):
    inv_n = 1.0 / x.shape[0]
    s1 = jnp.sum(x, axis=0, keepdims=True) * inv_n
    s2 = jnp.sum(x * x, axis=0, keepdims=True) * inv_n
    mean = jnp.dot(s1, gmat, preferred_element_type=jnp.float32)
    ex2 = jnp.dot(s2, gmat, preferred_element_type=jnp.float32)
    rstd = jax.lax.rsqrt(ex2 - mean * mean + GN_EPS)
    return mean, rstd


def _gn_kernel(x_ref, gamma_ref, beta_ref, gmat_ref, *rest, do_silu):
    if len(rest) == 2:
        bias_ref, o_ref = rest
    else:
        (o_ref,) = rest
        bias_ref = None
    B = x_ref.shape[0]
    gamma = gamma_ref[...]
    beta = beta_ref[...]
    gmat = gmat_ref[...]
    for b in range(B):                       # static, tiny batch
        x = x_ref[b].astype(jnp.float32)     # (N, C)
        if bias_ref is not None:
            x = x + bias_ref[b]              # fused per-(batch,channel) bias
        mean, rstd = _gn_stats(x, gmat)
        y = (x - mean) * (rstd * gamma) + beta
        if do_silu:
            y = y * jax.nn.sigmoid(y)
        o_ref[b] = y.astype(o_ref.dtype)


@functools.lru_cache(maxsize=None)
def _gn_call(B, N, C, has_bias, do_silu):
    kernel = functools.partial(_gn_kernel, do_silu=do_silu)
    return pl.pallas_call(
        kernel,
        out_shape=jax.ShapeDtypeStruct((B, N, C), ACT_DTYPE),
    )


def groupnorm(p, x3, bias=None, silu=False):
    """x3: (B, H*W, C).  Optional per-(batch,channel) bias (B, 1, C) f32."""
    B, N, C = x3.shape
    fn = _gn_call(B, N, C, bias is not None, silu)
    gmat = _group_matrix(C)
    if bias is None:
        return fn(x3, p["gamma"], p["beta"], gmat)
    return fn(x3, p["gamma"], p["beta"], gmat, bias)


def _attn_block_kernel(x_ref, gamma_ref, beta_ref, gmat_ref,
                       wq_ref, bq_ref, wk_ref, bk_ref, wv_ref, bv_ref,
                       wo_ref, bo_ref, o_ref):
    """Fused attention block: GN -> q/k/v proj -> SDPA -> out proj -> +x."""
    B, L, C = x_ref.shape
    scale = 1.0 / math.sqrt(C)               # PyTorch SDPA default scale
    gamma = gamma_ref[...]
    beta = beta_ref[...]
    gmat = gmat_ref[...]
    for b in range(B):
        x = x_ref[b].astype(jnp.float32)      # block input (residual source)
        mean, rstd = _gn_stats(x, gmat)
        h = ((x - mean) * (rstd * gamma) + beta).astype(jnp.bfloat16)
        q = jnp.dot(h, wq_ref[...], preferred_element_type=jnp.float32) + bq_ref[...]
        k = jnp.dot(h, wk_ref[...], preferred_element_type=jnp.float32) + bk_ref[...]
        v = jnp.dot(h, wv_ref[...], preferred_element_type=jnp.float32) + bv_ref[...]
        s = jax.lax.dot_general(q.astype(jnp.bfloat16), k.astype(jnp.bfloat16),
                                (((1,), (1,)), ((), ())),
                                preferred_element_type=jnp.float32) * scale
        m = jnp.max(s, axis=-1, keepdims=True)
        p = jnp.exp(s - m)
        l = jnp.sum(p, axis=-1, keepdims=True)
        o = jnp.dot(p.astype(jnp.bfloat16), v.astype(jnp.bfloat16),
                    preferred_element_type=jnp.float32)
        o = o * pl.reciprocal(l, approx=True)
        out = jnp.dot(o.astype(jnp.bfloat16), wo_ref[...],
                      preferred_element_type=jnp.float32) + bo_ref[...] + x
        o_ref[b] = out.astype(o_ref.dtype)


@functools.lru_cache(maxsize=None)
def _attn_block_call(B, L, C):
    return pl.pallas_call(
        _attn_block_kernel,
        out_shape=jax.ShapeDtypeStruct((B, L, C), ACT_DTYPE),
    )


# ----------------------------- module forwards -----------------------------

def resnet_block(p, x, emb_bias):
    # x: (B, H, W, Cin) NHWC bf16; emb_bias: (B, 1, Cout) = Linear(SiLU(emb))
    B, H, W, Cin = x.shape
    Cout = p["conv1"]["w9"].shape[2]
    h = groupnorm(p["norm1"], x.reshape(B, H * W, Cin), silu=True)
    h = conv2d_3x3(p["conv1"], h.reshape(B, H, W, Cin))
    h = groupnorm(p["norm2"], h.reshape(B, H * W, Cout), bias=emb_bias, silu=True)
    # TODO(synk): nn.Dropout(0.1) treated as eval-mode identity (no RNG dropout).
    h = conv2d_3x3(p["conv2"], h.reshape(B, H, W, Cout))
    if p["shortcut"] is None:
        return h + x                                   # identity residual (bf16)
    y = gemm(x.reshape(B * H * W, Cin), p["shortcut"]["w"], p["shortcut"]["b"],
             add=h.reshape(B * H * W, Cout))           # 1x1 conv + residual fused
    return y.reshape(B, H, W, Cout)


def attention_block(p, x):
    B, H, W, C = x.shape
    L = H * W
    gmat = _group_matrix(C)
    o = _attn_block_call(B, L, C)(
        x.reshape(B, L, C), p["norm"]["gamma"], p["norm"]["beta"], gmat,
        p["wq"], p["bq"], p["wk"], p["bk"], p["wv"], p["bv"],
        p["wo"], p["bo"])
    return o.reshape(B, H, W, C)


def upsample_nearest_2x(x):
    B, H, W, C = x.shape
    x = jnp.broadcast_to(x[:, :, None, :, None, :], (B, H, 2, W, 2, C))
    return x.reshape(B, 2 * H, 2 * W, C)


def run_block(block, x, emb_all):
    for mod in block:
        kind = mod["type"]
        if kind == "resnet":
            off, dim = mod["emb_off"], mod["emb_dim"]
            emb_bias = emb_all[:, off:off + dim][:, None, :]
            x = resnet_block(mod, x, emb_bias)
        elif kind == "attn":
            x = attention_block(mod, x)
        elif kind == "conv":
            x = conv2d_3x3(mod, x)
        elif kind == "down":
            x = conv2d_3x3(mod["conv"], x, stride=2)
        elif kind == "up":
            x = conv2d_3x3(mod["conv"], upsample_nearest_2x(x))
        else:
            raise ValueError(kind)
    return x


def model_forward(params, x_nchw, t):
    x = jnp.transpose(x_nchw, (0, 2, 3, 1)).astype(ACT_DTYPE)   # NCHW -> NHWC
    pe = params["pe"][t]                                        # (B, mc) f32
    e1 = gemm(pe, params["embed_lin1"]["w"], params["embed_lin1"]["b"],
              silu_out=True, out_dtype=jnp.float32)
    emb = gemm(e1, params["embed_lin2"]["w"], params["embed_lin2"]["b"],
               out_dtype=jnp.float32)
    # All per-resnet-block emb projections (Linear(SiLU(emb))) in one GEMM.
    emb_all = gemm(emb, params["emb_all_w"], params["emb_all_b"],
                   silu_in=True, out_dtype=jnp.float32)         # (B, sum Cout)

    hs = []
    for block in params["input_blocks"]:
        x = run_block(block, x, emb_all)
        hs.append(x)
    x = run_block(params["middle_block"], x, emb_all)
    for block in params["output_blocks"]:
        h = hs.pop()
        x = jnp.concatenate([x, h], axis=-1)           # channel concat (NHWC)
        x = run_block(block, x, emb_all)

    B, H, W, C = x.shape
    x = groupnorm(params["out_norm"], x.reshape(B, H * W, C), silu=True)
    x = conv2d_3x3(params["out_conv"], x.reshape(B, H, W, C))
    return jnp.transpose(x, (0, 3, 1, 2)).astype(jnp.float32)   # back to NCHW


# ------------------------------- param init --------------------------------

class KeyGen:
    def __init__(self, key):
        self._key = key
        self._i = 0

    def __call__(self):
        self._i += 1
        return jax.random.fold_in(self._key, self._i)


def init_conv3x3(kg, cin, cout):
    s = 1.0 / math.sqrt(cin * 9)
    w = jax.random.uniform(kg(), (cout, cin, 3, 3), jnp.float32, -s, s)
    w9 = jnp.transpose(w, (2, 3, 1, 0)).reshape(9, cin, cout).astype(jnp.bfloat16)
    b = jax.random.uniform(kg(), (1, cout), jnp.float32, -s, s)
    return {"w9": w9, "b": b}


def init_dense(kg, cin, cout):      # Linear / 1x1 Conv, weight stored (in, out)
    s = 1.0 / math.sqrt(cin)
    w = jax.random.uniform(kg(), (cout, cin), jnp.float32, -s, s)
    b = jax.random.uniform(kg(), (1, cout), jnp.float32, -s, s)
    return {"w": jnp.transpose(w).astype(jnp.bfloat16), "b": b}


def init_groupnorm(c):
    return {"gamma": jnp.ones((1, c), jnp.float32),
            "beta": jnp.zeros((1, c), jnp.float32)}


def init_attention(kg, c):
    s = 1.0 / math.sqrt(c)
    wqkv = jax.random.uniform(kg(), (3 * c, c), jnp.float32, -s, s)
    bqkv = jax.random.uniform(kg(), (3 * c,), jnp.float32, -s, s)
    wo = jax.random.uniform(kg(), (c, c), jnp.float32, -s, s)
    bo = jax.random.uniform(kg(), (1, c), jnp.float32, -s, s)
    return {
        "type": "attn", "norm": init_groupnorm(c),
        "wq": jnp.transpose(wqkv[:c]).astype(jnp.bfloat16),
        "bq": bqkv[:c].reshape(1, c),
        "wk": jnp.transpose(wqkv[c:2 * c]).astype(jnp.bfloat16),
        "bk": bqkv[c:2 * c].reshape(1, c),
        "wv": jnp.transpose(wqkv[2 * c:]).astype(jnp.bfloat16),
        "bv": bqkv[2 * c:].reshape(1, c),
        "wo": jnp.transpose(wo).astype(jnp.bfloat16),
        "bo": bo,
    }


def make_positional_encoding(d_model, max_len=1000):
    position = jnp.arange(max_len, dtype=jnp.float32)[:, None]
    div_term = jnp.exp(jnp.arange(0, d_model, 2, dtype=jnp.float32)
                       * (-math.log(10000.0) / d_model))
    ang = position * div_term
    pe = jnp.zeros((max_len, d_model), jnp.float32)
    pe = pe.at[:, 0::2].set(jnp.sin(ang))
    pe = pe.at[:, 1::2].set(jnp.cos(ang))
    return pe


def init_model(key, image_channels=3, model_channels=32, num_res_blocks=2,
               channel_mult=(1, 2, 2, 2), attention_resolutions=(2,)):
    kg = KeyGen(key)
    embed_dim = model_channels * 4
    emb_ws, emb_bs, emb_off = [], [], [0]

    def init_resnet(cin, cout):
        s = 1.0 / math.sqrt(embed_dim)
        ew = jax.random.uniform(kg(), (cout, embed_dim), jnp.float32, -s, s)
        eb = jax.random.uniform(kg(), (1, cout), jnp.float32, -s, s)
        emb_ws.append(jnp.transpose(ew).astype(jnp.bfloat16))
        emb_bs.append(eb)
        off = emb_off[-1]
        emb_off.append(off + cout)
        return {
            "type": "resnet",
            "norm1": init_groupnorm(cin),
            "conv1": init_conv3x3(kg, cin, cout),
            "norm2": init_groupnorm(cout),
            "conv2": init_conv3x3(kg, cout, cout),
            "shortcut": None if cin == cout else init_dense(kg, cin, cout),
            "emb_off": off,
            "emb_dim": cout,
        }

    params = {
        "pe": make_positional_encoding(model_channels),
        "embed_lin1": init_dense(kg, model_channels, embed_dim),
        "embed_lin2": init_dense(kg, embed_dim, embed_dim),
    }

    input_blocks = [[{**init_conv3x3(kg, image_channels, model_channels),
                      "type": "conv"}]]
    channels = [model_channels]
    ds = 1
    out_ch = model_channels
    for level, mult in enumerate(channel_mult):
        out_ch = model_channels * mult
        for _ in range(num_res_blocks):
            in_ch = channels[-1]
            block = [init_resnet(in_ch, out_ch)]
            if ds in attention_resolutions:
                block.append(init_attention(kg, out_ch))
            input_blocks.append(block)
            channels.append(out_ch)
        if level < len(channel_mult) - 1:
            input_blocks.append([{"type": "down",
                                  "conv": init_conv3x3(kg, out_ch, out_ch)}])
            channels.append(out_ch)
            ds *= 2
    params["input_blocks"] = input_blocks

    out_ch = model_channels * channel_mult[-1]
    params["middle_block"] = [init_resnet(out_ch, out_ch)
                              for _ in range(num_res_blocks)]

    output_blocks = []
    for level, mult in enumerate(reversed(channel_mult)):
        for i in range(num_res_blocks + 1):
            in_ch = out_ch + channels.pop()
            out_ch = model_channels * mult
            if level == len(channel_mult) - 1 and i == num_res_blocks:
                out_ch = model_channels
            block = [init_resnet(in_ch, out_ch)]
            if i == num_res_blocks and level < len(channel_mult) - 1:
                block.append({"type": "up",
                              "conv": init_conv3x3(kg, out_ch, out_ch)})
            output_blocks.append(block)
    params["output_blocks"] = output_blocks

    params["out_norm"] = init_groupnorm(model_channels)
    params["out_conv"] = init_conv3x3(kg, model_channels, image_channels)
    params["emb_all_w"] = jnp.concatenate(emb_ws, axis=1)
    params["emb_all_b"] = jnp.concatenate(emb_bs, axis=1)
    return params


# ----------------------------------- main -----------------------------------

if __name__ == "__main__":
    key = jax.random.PRNGKey(0)
    pkey, xkey = jax.random.split(key)

    # Small, GroupNorm(32)-compatible config: model_channels=32, 16x16 images.
    params = init_model(pkey, image_channels=3, model_channels=32)

    B, H, W = 2, 16, 16
    x = jax.random.normal(xkey, (B, 3, H, W), jnp.float32)   # NCHW like PyTorch
    t = jnp.array([7, 123], dtype=jnp.int32)

    y = model_forward(params, x, t)
    y = jax.block_until_ready(y)
    assert y.shape == (B, 3, H, W) and y.dtype == jnp.float32
    assert bool(jnp.all(jnp.isfinite(y)))
    print("KERNEL_OK")
</pallas_src>

<mosaic_0001>
module attributes {stable_mosaic.version = 11 : i64} {
  func.func @_gemm_kernel(%arg0: i32, %arg1: memref<2x32xf32, #tpu.memory_space<vmem>>, %arg2: memref<32x128xbf16, #tpu.memory_space<vmem>>, %arg3: memref<1x128xf32, #tpu.memory_space<vmem>>, %arg4: memref<2x128xf32, #tpu.memory_space<vmem>>) attributes {dimension_semantics = [#tpu.dimension_semantics<parallel>], iteration_bounds = array<i64: 1>, scalar_prefetch = 0 : i64, scratch_operands = 0 : i64, tpu.core_type = #tpu.core_type<tc>, window_params = [{transform_indices = @transform_0, window_bounds = array<i64: 2, 32>}, {pipeline_mode = #tpu.pipeline_mode<synchronous>, transform_indices = @transform_1, window_bounds = array<i64: 32, 128>}, {pipeline_mode = #tpu.pipeline_mode<synchronous>, transform_indices = @transform_2, window_bounds = array<i64: 1, 128>}, {transform_indices = @transform_3, window_bounds = array<i64: 2, 128>}]} {
    %c0 = arith.constant 0 : index
    %c0_0 = arith.constant 0 : index
    %0 = vector.load %arg1[%c0, %c0_0] : memref<2x32xf32, #tpu.memory_space<vmem>>, vector<2x32xf32>
    %1 = arith.truncf %0 : vector<2x32xf32> to vector<2x32xbf16>
    %c0_1 = arith.constant 0 : index
    %c0_2 = arith.constant 0 : index
    %2 = vector.load %arg2[%c0_1, %c0_2] : memref<32x128xbf16, #tpu.memory_space<vmem>>, vector<32x128xbf16>
    %cst = arith.constant dense<0.000000e+00> : vector<2x128xf32>
    %3 = tpu.matmul %1, %2, %cst {dimension_numbers = #tpu.dot_dimension_numbers<[1], [0], [0], [1], [0, 0, 1, 1], [], []>} : vector<2x32xbf16>, vector<32x128xbf16>, vector<2x128xf32> -> vector<2x128xf32>
    %c0_3 = arith.constant 0 : index
    %c0_4 = arith.constant 0 : index
    %4 = vector.load %arg3[%c0_3, %c0_4] : memref<1x128xf32, #tpu.memory_space<vmem>>, vector<1x128xf32>
    %5 = vector.broadcast %4 : vector<1x128xf32> to vector<2x128xf32>
    %6 = arith.addf %3, %5 : vector<2x128xf32>
    %7 = arith.negf %6 : vector<2x128xf32>
    %8 = math.exp %7 : vector<2x128xf32>
    %cst_5 = arith.constant 1.000000e+00 : f32
    %9 = vector.broadcast %cst_5 : f32 to vector<2x128xf32>
    %10 = arith.addf %9, %8 : vector<2x128xf32>
    %11 = arith.divf %9, %10 : vector<2x128xf32>
    %12 = arith.mulf %6, %11 : vector<2x128xf32>
    %c0_6 = arith.constant 0 : index
    %c0_7 = arith.constant 0 : index
    %13 = vector.load %arg4[%c0_6, %c0_7] : memref<2x128xf32, #tpu.memory_space<vmem>>, vector<2x128xf32>
    tpu.vector_store %arg4[%c0_6, %c0_7], %12 {strides = array<i32>} : memref<2x128xf32, #tpu.memory_space<vmem>>, vector<2x128xf32>,
    return
  }
  func.func @transform_0(%arg0: i32) -> (i32, i32) {
    %c0_i32 = arith.constant 0 : i32
    %c0_i32_0 = arith.constant 0 : i32
    return %arg0, %c0_i32 : i32, i32
  }
  func.func @transform_1(%arg0: i32) -> (i32, i32) {
    %c0_i32 = arith.constant 0 : i32
    %c0_i32_0 = arith.constant 0 : i32
    %c0_i32_1 = arith.constant 0 : i32
    return %c0_i32, %c0_i32_0 : i32, i32
  }
  func.func @transform_2(%arg0: i32) -> (i32, i32) {
    %c0_i32 = arith.constant 0 : i32
    %c0_i32_0 = arith.constant 0 : i32
    %c0_i32_1 = arith.constant 0 : i32
    return %c0_i32, %c0_i32_0 : i32, i32
  }
  func.func @transform_3(%arg0: i32) -> (i32, i32) {
    %c0_i32 = arith.constant 0 : i32
    %c0_i32_0 = arith.constant 0 : i32
    return %arg0, %c0_i32 : i32, i32
  }
}

</mosaic_0001>

<llo_original>
// kernel: tpu_custom_call.1
$region0: #{tpu_custom_call.1}
  #allocation0 [shape = 'u32[]', space=smem, size = 0x4, offset = 0x4, fixed_abs, tag = 'smem constant byte address 0x4 - core index']
  #allocation1 [shape = 'u32[144,128]{1,0:T(1,128)}', space=vmem, size = 0x12000, scoped, tag = 'internal scratch']
  %s0 = inlined_call_operand.hbm [shape: f32[2,32], index: 0, kind: input, shape index: {}]
  %s1 = inlined_call_operand.hbm [shape: bf16[32,128], index: 1, kind: input, shape index: {}]
  %s2 = inlined_call_operand.vmem [shape: f32[1,128], index: 2, kind: input, shape index: {}]
  %s3 = inlined_call_operand.hbm [shape: f32[2,128], index: 3, kind: output, shape index: {}]
  %s4 = sld [smem:[#allocation0]]
  $region30: #{tpu_custom_call.1} parent=0
    _
  %s6 = ssub.s32 1, %s4
  %s7 = scalar_select 0, %s6, %s4
  $region1: #{tpu_custom_call.1} parent=0
    #allocation2 [shape = 'u8[1024]{0}', space=vmem, size = 0x400, scoped, tag = 'input window, operand 0, single buffered']
    #allocation3 [shape = 's32[1]{0}', space=sflag, size = 0x4, scoped, tag = 'scoped memory for tpu_custom_call.1']
    #allocation4 [shape = 's32[1]{0}', space=sflag, size = 0x4, scoped, tag = 'scoped memory for tpu_custom_call.1']
    #allocation5 [shape = 'u8[8192]{0}', space=vmem, size = 0x2000, scoped, tag = 'input window, operand 1, single buffered']
    #allocation6 [shape = 's32[1]{0}', space=sflag, size = 0x4, scoped, tag = 'scoped memory for tpu_custom_call.1']
    #allocation7 [shape = 'u8[1024]{0}', space=vmem, size = 0x400, scoped, tag = 'output window, operand 0, single buffered']
    %8 = vsyncpa [#allocation3], 0
    %9 = vsyncpa [#allocation6], 0
    %10 = vsyncpa [#allocation4], 0
    // Predicated region
    $region2: #{tpu_custom_call.1} parent=1 // pred_check
      _
    $region3: #{tpu_custom_call.1} parent=1 // pred_check_branch
      %12 = sbr.rel (0) target = $region5
    $region4: #{tpu_custom_call.1} parent=1 // pred_region
      %s14 = ssub.s32 32, 32
      %15 = vsyncadd [#allocation3], %s14
      %s17 = sshll.u32 [#allocation2], 4
      %s18 = int_to_ptr.vmem [resolvable:$true] %s17
      %20 = dma.hbm_to_vmem [thread:$0]  %s0, 32, %s18, [#allocation3]
    $region5: #{tpu_custom_call.1} parent=1 // pred_fallthru
      _
    // Predicated region
    $region6: #{tpu_custom_call.1} parent=1 // pred_check
      _
    $region7: #{tpu_custom_call.1} parent=1 // pred_check_branch
      %22 = sbr.rel (0) target = $region9
    $region8: #{tpu_custom_call.1} parent=1 // pred_region
      %s24 = ssub.s32 256, 256
      %25 = vsyncadd [#allocation6], %s24
      %s26 = sshll.u32 [#allocation5], 4
      %s27 = int_to_ptr.vmem [resolvable:$true] %s26
      %32 = dma.hbm_to_vmem [thread:$0]  %s1, 256, %s27, [#allocation6], 64, 64, 4
    $region9: #{tpu_custom_call.1} parent=1 // pred_fallthru
      _
    // Predicated region
    $region10: #{tpu_custom_call.1} parent=1 // pred_check
      _
    $region11: #{tpu_custom_call.1} parent=1 // pred_check_branch
      %34 = sbr.rel (0) target = $region13
    $region12: #{tpu_custom_call.1} parent=1 // pred_region
      _
    $region13: #{tpu_custom_call.1} parent=1 // pred_fallthru
      _
    // Predicated region
    $region14: #{tpu_custom_call.1} parent=1 // pred_check
      _
    $region15: #{tpu_custom_call.1} parent=1 // pred_check_branch
      %36 = sbr.rel (0) target = $region17
    $region16: #{tpu_custom_call.1} parent=1 // pred_region
      %37 = dma.done [#allocation3], 32
    $region17: #{tpu_custom_call.1} parent=1 // pred_fallthru
      _
    // Predicated region
    $region18: #{tpu_custom_call.1} parent=1 // pred_check
      _
    $region19: #{tpu_custom_call.1} parent=1 // pred_check_branch
      %39 = sbr.rel (0) target = $region21
    $region20: #{tpu_custom_call.1} parent=1 // pred_region
      %40 = dma.done [#allocation6], 256
    $region21: #{tpu_custom_call.1} parent=1 // pred_fallthru
      _
    %v42 = vld [vmem:[#allocation2] sm:$0x3]
    %v43 = vpack.c.bf16 %v42, %v42
    %v44 = vld [vmem:[#allocation5] sm:$0xf]
    %v45 = vld [vmem:[#allocation5 + $0x4] sm:$0xf]
    %v46 = vld [vmem:[#allocation5 + $0x8] sm:$0xf]
    %v47 = vld [vmem:[#allocation5 + $0xc] sm:$0xf]
    %v48 = vld [vmem:[%s2] sm:$0x1]
    %v50 = vlaneseq
    %v51 = vshrl.u32 %v50, 7
    %v52 = vsub.s32 0, %v51
    %v53 = vrot.slane %v48, %v52
    %v59 = vunpack.c.l.b16 %v44
    %v60 = vunpack.c.l.b16 %v45
    %v61 = vunpack.c.l.b16 %v46
    %v62 = vunpack.c.l.b16 %v47
    %v63 = vpack.c.b16 %v60, %v59
    %v64 = vpack.c.b16 %v62, %v61
    %vm67 = vcmask 261120
    %v69 = vsel %vm67, %v43, 0
    %71 = vmatprep.subr.bf16.mxu0 0
    %72 = vmatpush1.bf16.msra.mxu0 0
    %73 = vmatprep.subr.bf16.mxu0 0
    %74 = vmatpush1.bf16.msra.mxu0 0
    %75 = vmatprep.subr.bf16.mxu0 0
    %76 = vmatpush1.bf16.msra.mxu0 0
    %77 = vmatprep.subr.bf16.mxu0 0
    %78 = vmatpush1.bf16.msra.mxu0 0
    %79 = vmatprep.subr.bf16.mxu0 0
    %80 = vmatpush1.bf16.msra.mxu0 0
    %81 = vmatprep.subr.bf16.mxu0 0
    %82 = vmatpush1.bf16.msra.mxu0 0
    %83 = vmatprep.subr.bf16.mxu0 0
    %84 = vmatpush1.bf16.msra.mxu0 %v64
    %85 = vmatprep.subr.bf16.mxu0 0
    %86 = vmatpush1.bf16.msra.mxu0 %v63
    %87 = vmatprep.subr.bf16.mxu0 0
    %88 = vmatpush2.bf16.msra.mxu0 0
    %89 = vmatprep.subr.bf16.mxu0 0
    %90 = vmatpush2.bf16.msra.mxu0 0
    %91 = vmatprep.subr.bf16.mxu0 0
    %92 = vmatpush2.bf16.msra.mxu0 0
    %93 = vmatprep.subr.bf16.mxu0 0
    %94 = vmatpush2.bf16.msra.mxu0 0
    %95 = vmatprep.subr.bf16.mxu0 0
    %96 = vmatpush2.bf16.msra.mxu0 0
    %97 = vmatprep.subr.bf16.mxu0 0
    %98 = vmatpush2.bf16.msra.mxu0 0
    %99 = vmatprep.subr.bf16.mxu0 0
    %100 = vmatpush2.bf16.msra.mxu0 0
    %101 = vmatprep.subr.bf16.mxu0 0
    %102 = vmatpush2.bf16.msra.mxu0 0
    %103 = vmatprep.mubr.bf16.mxu0 0
    %104 = vmatmul.mubr.bf16.gmra.mxu0 %v69
    %v105 = vpop.f32.mrf.mxu0
    %v106 = vadd.f32 %v53, %v105
    %v107 = vpop.f32.mrf.mxu0
    %v108 = vpop.f32.mrf.mxu0
    %v109 = vpop.f32.mrf.mxu0
    %110 = vdwg.mxu0
    %v111 = vxor.u32 %v106, 2147483648
    %v112 = vmul.f32 %v111, 1.442695
    %v113 = vpow.pop %v112
    %v114 = vadd.f32 %v113, 1.0
    %v115 = vrcp.pop %v114
    %v116 = vmul.f32 1.0, %v115
    %v117 = vmul.f32 %v106, %v116
    %118 = vst [vmem:[#allocation7] sm:$0x3] %v117
    // Predicated region
    $region22: #{tpu_custom_call.1} parent=1 // pred_check
      _
    $region23: #{tpu_custom_call.1} parent=1 // pred_check_branch
      %120 = sbr.rel (0) target = $region25
    $region24: #{tpu_custom_call.1} parent=1 // pred_region
      %s122 = ssub.s32 32, 32
      %123 = vsyncadd [#allocation4], %s122
      %s125 = sshll.u32 [#allocation7], 4
      %s126 = int_to_ptr.vmem [resolvable:$true] %s125
      %128 = dma.vmem_to_hbm [thread:$0]  %s126, 32, %s3, [#allocation4]
    $region25: #{tpu_custom_call.1} parent=1 // pred_fallthru
      _
    // Predicated region
    $region26: #{tpu_custom_call.1} parent=1 // pred_check
      _
    $region27: #{tpu_custom_call.1} parent=1 // pred_check_branch
      %130 = sbr.rel (0) target = $region29
    $region28: #{tpu_custom_call.1} parent=1 // pred_region
      %131 = dma.done [#allocation4], 32
    $region29: #{tpu_custom_call.1} parent=1 // pred_fallthru
      _
    %132 = vsyncpa [#allocation3], 1
    %133 = vsyncpa [#allocation6], 1
    %134 = vsyncpa [#allocation4], 1

</llo_original>
